<compile_context>
chip_gen: v7x
topology: tpu7x:2x2x1
jax: 0.10.0
libtpu: 0.0.40
codegen_flags: <defaults>
</compile_context>

<pallas_src>
import jax
import jax.numpy as jnp
from jax.experimental import pallas as pl
from jax.experimental.pallas import tpu as pltpu


def _round_up(x, m):
    return ((x + m - 1) // m) * m


def _head_kernel(x_ref, arg_ref,
                 w1_ref, b1_ref,
                 w2_ref, b2_ref,
                 w3x_ref, w3a_ref, b3_ref,
                 y_ref):
    # dropout(hidden_dropout_prob) is identity in eval mode.
    # dense + tanh: MXU accumulates in f32; tanh stays in f32 (v5e has no bf16
    # VPU/EUP path).  Bias re-broadcast per grid step is cheap VPU filler.
    h = jnp.tanh(
        jnp.dot(x_ref[...], w1_ref[...], preferred_element_type=jnp.float32)
        + b1_ref[...].astype(jnp.float32))
    a = jnp.tanh(
        jnp.dot(arg_ref[...], w2_ref[...], preferred_element_type=jnp.float32)
        + b2_ref[...].astype(jnp.float32))
    # out_proj over concat([h, a]) == h @ W3x + a @ W3a + b3 (exact split).
    h = h.astype(w3x_ref.dtype)
    a = a.astype(w3a_ref.dtype)
    y = (jnp.dot(h, w3x_ref[...], preferred_element_type=jnp.float32)
         + jnp.dot(a, w3a_ref[...], preferred_element_type=jnp.float32)
         + b3_ref[...].astype(jnp.float32))
    y_ref[...] = y.astype(y_ref.dtype)


_VMEM_TILE_BUDGET = 24 << 20   # v7x-safe working-set budget for tile selection


def _pick_tile_m(requested, n_rows, H, A, R, L, stream_bytes):
    """Pick a row-tile size that fits the VMEM budget, plus a vmem limit."""
    row_align = 8 * max(1, 4 // stream_bytes)          # 8 for f32, 16 for bf16
    # Resident weights + biases (x2: BlockSpec double-buffers even constant blocks).
    weight_bytes = 2 * stream_bytes * (H * R + A * A + (R + A) * L + R + A + L)
    # Per-row VMEM cost: double-buffered streamed inputs/output + f32 intermediates.
    per_row = (2 * stream_bytes * (H + A)   # x / arg tiles (double buffered)
               + 2 * 4 * L                  # output tile   (double buffered, <= f32)
               + 4 * (R + A + L))           # h / a / y intermediates (f32 vregs)
    avail = max(_VMEM_TILE_BUDGET - weight_bytes, row_align * per_row)
    vmem_cap = max(row_align, (avail // per_row) // row_align * row_align)

    tm = min(requested, vmem_cap, _round_up(n_rows, row_align))
    tm = max(row_align, (tm // row_align) * row_align)
    # Keep >=2 grid steps when the workload allows it (v7x megacore sharding).
    if tm >= n_rows and n_rows >= 2 * row_align:
        tm = max(row_align, _round_up(-(-n_rows // 2), row_align))

    vmem_limit = int(min(48 << 20,
                         max(32 << 20, weight_bytes + tm * per_row + (8 << 20))))
    return tm, vmem_limit


def arg_classification_head(x, arg_feature, params, *, tile_m=1024,
                            stream_dtype=jnp.bfloat16,
                            pad_output_lanes=False):
    """x: (B, T, hidden), arg_feature: (B, T, arg_feat) -> (B, T, num_labels)."""
    B, T, H = x.shape
    _, _, A = arg_feature.shape
    w1, b1, w2, b2, w3, b3 = (params["w1"], params["b1"], params["w2"],
                              params["b2"], params["w3"], params["b3"])
    R = w1.shape[1]            # sentence_repr_size
    L = w3.shape[1]            # num_labels
    assert w3.shape[0] == R + A

    out_dtype = x.dtype
    cdt = stream_dtype if stream_dtype is not None else x.dtype
    cbytes = jnp.dtype(cdt).itemsize

    # Split out_proj weight so the kernel avoids the concat.
    w3x, w3a = w3[:R, :], w3[R:, :]

    # Optional lane-dense output (unmasked vst): pad num_labels up to 128.
    Lp = _round_up(L, 128) if (pad_output_lanes and L % 128 != 0) else L
    if Lp != L:
        w3x = jnp.pad(w3x, ((0, 0), (0, Lp - L)))
        w3a = jnp.pad(w3a, ((0, 0), (0, Lp - L)))
        b3 = jnp.pad(b3, (0, Lp - L))

    N = B * T
    tm, vmem_limit = _pick_tile_m(tile_m, N, H, A, R, Lp, cbytes)
    Np = _round_up(N, tm)

    x2 = x.reshape(N, H).astype(cdt)
    a2 = arg_feature.reshape(N, A).astype(cdt)
    if Np != N:
        # Pad rows instead of shrinking the tile: keeps the roofline-friendly
        # block size for arbitrary B*T; padded rows are sliced off afterwards.
        x2 = jnp.pad(x2, ((0, Np - N), (0, 0)))
        a2 = jnp.pad(a2, ((0, Np - N), (0, 0)))

    grid = (Np // tm,)

    row_spec = lambda feat: pl.BlockSpec((tm, feat), lambda i: (i, 0))
    full_spec = lambda shape: pl.BlockSpec(shape, lambda i: (0, 0))

    cost = pl.CostEstimate(
        flops=2 * N * (H * R + A * A + (R + A) * Lp),
        transcendentals=N * (R + A),
        bytes_accessed=(cbytes * (N * (H + A) + H * R + A * A + (R + A) * Lp)
                        + jnp.dtype(out_dtype).itemsize * N * Lp),
    )

    y2 = pl.pallas_call(
        _head_kernel,
        out_shape=jax.ShapeDtypeStruct((Np, Lp), out_dtype),
        grid=grid,
        in_specs=[
            row_spec(H),           # x tile     (streamed)
            row_spec(A),           # arg tile   (streamed)
            full_spec((H, R)),     # W1         (resident)
            full_spec((1, R)),     # b1
            full_spec((A, A)),     # W2
            full_spec((1, A)),     # b2
            full_spec((R, Lp)),    # W3[:R]
            full_spec((A, Lp)),    # W3[R:]
            full_spec((1, Lp)),    # b3
        ],
        out_specs=row_spec(Lp),
        compiler_params=pltpu.CompilerParams(
            dimension_semantics=("parallel",),
            vmem_limit_bytes=vmem_limit),
        cost_estimate=cost,
    )(x2, a2,
      w1.astype(cdt), b1.reshape(1, R).astype(cdt),
      w2.astype(cdt), b2.reshape(1, A).astype(cdt),
      w3x.astype(cdt), w3a.astype(cdt), b3.reshape(1, Lp).astype(cdt))

    return y2[:N, :L].reshape(B, T, L)


def init_params(key, hidden_size, arg_feature_size, sentence_repr_size,
                num_labels, dtype=jnp.float32):
    ks = jax.random.split(key, 6)

    def lin(k, fan_in, fan_out):
        bound = 1.0 / jnp.sqrt(fan_in)
        return jax.random.uniform(k, (fan_in, fan_out), dtype,
                                  minval=-bound, maxval=bound)

    return {
        "w1": lin(ks[0], hidden_size, sentence_repr_size),
        "b1": jax.random.uniform(ks[1], (sentence_repr_size,), dtype,
                                 minval=-0.1, maxval=0.1),
        "w2": lin(ks[2], arg_feature_size, arg_feature_size),
        "b2": jax.random.uniform(ks[3], (arg_feature_size,), dtype,
                                 minval=-0.1, maxval=0.1),
        "w3": lin(ks[4], sentence_repr_size + arg_feature_size, num_labels),
        "b3": jax.random.uniform(ks[5], (num_labels,), dtype,
                                 minval=-0.1, maxval=0.1),
    }


def _reference(x, arg, p):
    h = jnp.tanh(x @ p["w1"] + p["b1"])
    a = jnp.tanh(arg @ p["w2"] + p["b2"])
    cat = jnp.concatenate([h, a], axis=-1)
    return cat @ p["w3"] + p["b3"]


if __name__ == "__main__":
    # Small shapes consistent with the module's forward:
    # x: (batch, seq, hidden), arg_feature: (batch, seq, arg_feature_size)
    B, T = 2, 8
    hidden_size = 32
    arg_feature_size = 16
    sentence_repr_size = 32
    num_labels = 4

    key = jax.random.PRNGKey(0)
    k_x, k_arg, k_p = jax.random.split(key, 3)
    x = jax.random.normal(k_x, (B, T, hidden_size), jnp.float32)
    arg_feature = jax.random.normal(k_arg, (B, T, arg_feature_size), jnp.float32)
    params = init_params(k_p, hidden_size, arg_feature_size,
                         sentence_repr_size, num_labels)

    y_ref = _reference(x, arg_feature, params)

    # 1) Full-f32 streaming path (exact vs reference).
    y_f32 = jax.block_until_ready(
        arg_classification_head(x, arg_feature, params, stream_dtype=None))
    assert y_f32.shape == (B, T, num_labels)
    assert jnp.allclose(y_f32, y_ref, atol=1e-5, rtol=1e-5), "f32 mismatch"

    # 2) Default bf16-streaming path (halves HBM traffic; f32 accumulation).
    y_bf16 = jax.block_until_ready(
        arg_classification_head(x, arg_feature, params))
    assert jnp.allclose(y_bf16, y_ref, atol=5e-2, rtol=5e-2), "bf16 mismatch"

    # 3) Lane-dense (padded num_labels -> 128) output variant.
    y_pad = jax.block_until_ready(
        arg_classification_head(x, arg_feature, params, pad_output_lanes=True))
    assert jnp.allclose(y_pad, y_ref, atol=5e-2, rtol=5e-2), "padded-out mismatch"

    print("KERNEL_OK")
</pallas_src>

<mosaic_0001>
module attributes {stable_mosaic.version = 11 : i64} {
  func.func @_head_kernel(%arg0: i32, %arg1: memref<8x32xf32, #tpu.memory_space<vmem>>, %arg2: memref<8x16xf32, #tpu.memory_space<vmem>>, %arg3: memref<32x32xf32, #tpu.memory_space<vmem>>, %arg4: memref<1x32xf32, #tpu.memory_space<vmem>>, %arg5: memref<16x16xf32, #tpu.memory_space<vmem>>, %arg6: memref<1x16xf32, #tpu.memory_space<vmem>>, %arg7: memref<32x4xf32, #tpu.memory_space<vmem>>, %arg8: memref<16x4xf32, #tpu.memory_space<vmem>>, %arg9: memref<1x4xf32, #tpu.memory_space<vmem>>, %arg10: memref<8x4xf32, #tpu.memory_space<vmem>>) attributes {dimension_semantics = [#tpu.dimension_semantics<parallel>], iteration_bounds = array<i64: 2>, scalar_prefetch = 0 : i64, scratch_operands = 0 : i64, tpu.core_type = #tpu.core_type<tc>, window_params = [{transform_indices = @transform_0, window_bounds = array<i64: 8, 32>}, {transform_indices = @transform_1, window_bounds = array<i64: 8, 16>}, {pipeline_mode = #tpu.pipeline_mode<synchronous>, transform_indices = @transform_2, window_bounds = array<i64: 32, 32>}, {pipeline_mode = #tpu.pipeline_mode<synchronous>, transform_indices = @transform_3, window_bounds = array<i64: 1, 32>}, {pipeline_mode = #tpu.pipeline_mode<synchronous>, transform_indices = @transform_4, window_bounds = array<i64: 16, 16>}, {pipeline_mode = #tpu.pipeline_mode<synchronous>, transform_indices = @transform_5, window_bounds = array<i64: 1, 16>}, {pipeline_mode = #tpu.pipeline_mode<synchronous>, transform_indices = @transform_6, window_bounds = array<i64: 32, 4>}, {pipeline_mode = #tpu.pipeline_mode<synchronous>, transform_indices = @transform_7, window_bounds = array<i64: 16, 4>}, {pipeline_mode = #tpu.pipeline_mode<synchronous>, transform_indices = @transform_8, window_bounds = array<i64: 1, 4>}, {transform_indices = @transform_9, window_bounds = array<i64: 8, 4>}]} {
    %c0 = arith.constant 0 : index
    %c0_0 = arith.constant 0 : index
    %0 = vector.load %arg1[%c0, %c0_0] : memref<8x32xf32, #tpu.memory_space<vmem>>, vector<8x32xf32>
    %c0_1 = arith.constant 0 : index
    %c0_2 = arith.constant 0 : index
    %1 = vector.load %arg3[%c0_1, %c0_2] : memref<32x32xf32, #tpu.memory_space<vmem>>, vector<32x32xf32>
    %cst = arith.constant dense<0.000000e+00> : vector<8x32xf32>
    %2 = tpu.matmul %0, %1, %cst {dimension_numbers = #tpu.dot_dimension_numbers<[1], [0], [0], [1], [0, 0, 1, 1], [], []>} : vector<8x32xf32>, vector<32x32xf32>, vector<8x32xf32> -> vector<8x32xf32>
    %c0_3 = arith.constant 0 : index
    %c0_4 = arith.constant 0 : index
    %3 = vector.load %arg4[%c0_3, %c0_4] : memref<1x32xf32, #tpu.memory_space<vmem>>, vector<1x32xf32>
    %4 = vector.broadcast %3 : vector<1x32xf32> to vector<8x32xf32>
    %5 = arith.addf %2, %4 : vector<8x32xf32>
    %6 = math.tanh %5 : vector<8x32xf32>
    %c0_5 = arith.constant 0 : index
    %c0_6 = arith.constant 0 : index
    %7 = vector.load %arg2[%c0_5, %c0_6] : memref<8x16xf32, #tpu.memory_space<vmem>>, vector<8x16xf32>
    %c0_7 = arith.constant 0 : index
    %c0_8 = arith.constant 0 : index
    %8 = vector.load %arg5[%c0_7, %c0_8] : memref<16x16xf32, #tpu.memory_space<vmem>>, vector<16x16xf32>
    %cst_9 = arith.constant dense<0.000000e+00> : vector<8x16xf32>
    %9 = tpu.matmul %7, %8, %cst_9 {dimension_numbers = #tpu.dot_dimension_numbers<[1], [0], [0], [1], [0, 0, 1, 1], [], []>} : vector<8x16xf32>, vector<16x16xf32>, vector<8x16xf32> -> vector<8x16xf32>
    %c0_10 = arith.constant 0 : index
    %c0_11 = arith.constant 0 : index
    %10 = vector.load %arg6[%c0_10, %c0_11] : memref<1x16xf32, #tpu.memory_space<vmem>>, vector<1x16xf32>
    %11 = vector.broadcast %10 : vector<1x16xf32> to vector<8x16xf32>
    %12 = arith.addf %9, %11 : vector<8x16xf32>
    %13 = math.tanh %12 : vector<8x16xf32>
    %c0_12 = arith.constant 0 : index
    %c0_13 = arith.constant 0 : index
    %14 = vector.load %arg7[%c0_12, %c0_13] : memref<32x4xf32, #tpu.memory_space<vmem>>, vector<32x4xf32>
    %cst_14 = arith.constant dense<0.000000e+00> : vector<8x4xf32>
    %15 = tpu.matmul %6, %14, %cst_14 {dimension_numbers = #tpu.dot_dimension_numbers<[1], [0], [0], [1], [0, 0, 1, 1], [], []>} : vector<8x32xf32>, vector<32x4xf32>, vector<8x4xf32> -> vector<8x4xf32>
    %c0_15 = arith.constant 0 : index
    %c0_16 = arith.constant 0 : index
    %16 = vector.load %arg8[%c0_15, %c0_16] : memref<16x4xf32, #tpu.memory_space<vmem>>, vector<16x4xf32>
    %cst_17 = arith.constant dense<0.000000e+00> : vector<8x4xf32>
    %17 = tpu.matmul %13, %16, %cst_17 {dimension_numbers = #tpu.dot_dimension_numbers<[1], [0], [0], [1], [0, 0, 1, 1], [], []>} : vector<8x16xf32>, vector<16x4xf32>, vector<8x4xf32> -> vector<8x4xf32>
    %18 = arith.addf %15, %17 : vector<8x4xf32>
    %c0_18 = arith.constant 0 : index
    %c0_19 = arith.constant 0 : index
    %19 = vector.load %arg9[%c0_18, %c0_19] : memref<1x4xf32, #tpu.memory_space<vmem>>, vector<1x4xf32>
    %20 = vector.broadcast %19 : vector<1x4xf32> to vector<8x4xf32>
    %21 = arith.addf %18, %20 : vector<8x4xf32>
    %c0_20 = arith.constant 0 : index
    %c0_21 = arith.constant 0 : index
    %22 = vector.load %arg10[%c0_20, %c0_21] : memref<8x4xf32, #tpu.memory_space<vmem>>, vector<8x4xf32>
    tpu.vector_store %arg10[%c0_20, %c0_21], %21 {strides = array<i32>} : memref<8x4xf32, #tpu.memory_space<vmem>>, vector<8x4xf32>,
    return
  }
  func.func @transform_0(%arg0: i32) -> (i32, i32) {
    %c0_i32 = arith.constant 0 : i32
    %c0_i32_0 = arith.constant 0 : i32
    return %arg0, %c0_i32 : i32, i32
  }
  func.func @transform_1(%arg0: i32) -> (i32, i32) {
    %c0_i32 = arith.constant 0 : i32
    %c0_i32_0 = arith.constant 0 : i32
    return %arg0, %c0_i32 : i32, i32
  }
  func.func @transform_2(%arg0: i32) -> (i32, i32) {
    %c0_i32 = arith.constant 0 : i32
    %c0_i32_0 = arith.constant 0 : i32
    %c0_i32_1 = arith.constant 0 : i32
    return %c0_i32, %c0_i32_0 : i32, i32
  }
  func.func @transform_3(%arg0: i32) -> (i32, i32) {
    %c0_i32 = arith.constant 0 : i32
    %c0_i32_0 = arith.constant 0 : i32
    %c0_i32_1 = arith.constant 0 : i32
    return %c0_i32, %c0_i32_0 : i32, i32
  }
  func.func @transform_4(%arg0: i32) -> (i32, i32) {
    %c0_i32 = arith.constant 0 : i32
    %c0_i32_0 = arith.constant 0 : i32
    %c0_i32_1 = arith.constant 0 : i32
    return %c0_i32, %c0_i32_0 : i32, i32
  }
  func.func @transform_5(%arg0: i32) -> (i32, i32) {
    %c0_i32 = arith.constant 0 : i32
    %c0_i32_0 = arith.constant 0 : i32
    %c0_i32_1 = arith.constant 0 : i32
    return %c0_i32, %c0_i32_0 : i32, i32
  }
  func.func @transform_6(%arg0: i32) -> (i32, i32) {
    %c0_i32 = arith.constant 0 : i32
    %c0_i32_0 = arith.constant 0 : i32
    %c0_i32_1 = arith.constant 0 : i32
    return %c0_i32, %c0_i32_0 : i32, i32
  }
  func.func @transform_7(%arg0: i32) -> (i32, i32) {
    %c0_i32 = arith.constant 0 : i32
    %c0_i32_0 = arith.constant 0 : i32
    %c0_i32_1 = arith.constant 0 : i32
    return %c0_i32, %c0_i32_0 : i32, i32
  }
  func.func @transform_8(%arg0: i32) -> (i32, i32) {
    %c0_i32 = arith.constant 0 : i32
    %c0_i32_0 = arith.constant 0 : i32
    %c0_i32_1 = arith.constant 0 : i32
    return %c0_i32, %c0_i32_0 : i32, i32
  }
  func.func @transform_9(%arg0: i32) -> (i32, i32) {
    %c0_i32 = arith.constant 0 : i32
    %c0_i32_0 = arith.constant 0 : i32
    return %arg0, %c0_i32 : i32, i32
  }
}

</mosaic_0001>

<llo_original>
// kernel: tpu_custom_call.1
$region0: #{tpu_custom_call.1}
  #allocation0 [shape = 'u32[]', space=smem, size = 0x4, offset = 0x4, fixed_abs, tag = 'smem constant byte address 0x4 - core index']
  #allocation1 [shape = 'u32[144,128]{1,0:T(1,128)}', space=vmem, size = 0x12000, scoped, tag = 'internal scratch']
  %s0 = inlined_call_operand.vmem [shape: f32[16,32], index: 0, kind: input, shape index: {}]
  %s1 = inlined_call_operand.hbm [shape: f32[16,16], index: 1, kind: input, shape index: {}]
  %s2 = inlined_call_operand.vmem [shape: f32[32,32], index: 2, kind: input, shape index: {}]
  %s3 = inlined_call_operand.vmem [shape: f32[1,32], index: 3, kind: input, shape index: {}]
  %s4 = inlined_call_operand.vmem [shape: f32[16,16], index: 4, kind: input, shape index: {}]
  %s5 = inlined_call_operand.vmem [shape: f32[1,16], index: 5, kind: input, shape index: {}]
  %s6 = inlined_call_operand.vmem [shape: f32[32,4], index: 6, kind: input, shape index: {}]
  %s7 = inlined_call_operand.vmem [shape: f32[16,4], index: 7, kind: input, shape index: {}]
  %s8 = inlined_call_operand.vmem [shape: f32[1,4], index: 8, kind: input, shape index: {}]
  %s9 = inlined_call_operand.vmem [shape: f32[16,4], index: 9, kind: output, shape index: {}]
  %s10 = sld [smem:[#allocation0]]
  $region73: #{tpu_custom_call.1} parent=0
    _
  %s12 = ssub.s32 1, %s10
  %s13 = scalar_select 0, %s12, %s10
  $region1: #{tpu_custom_call.1} parent=0
    #allocation2 [shape = 'u8[8192]{0}', space=vmem, size = 0x2000, scoped, tag = 'input window, operand 1']
    #allocation3 [shape = 's32[2]{0}', space=sflag, size = 0x8, scoped, tag = 'scoped memory for tpu_custom_call.1']
    %14 = vsyncpa [#allocation3], 0
    %s15 = scalar_lea.sflag [#allocation3], 1
    %16 = vsyncpa %s15, 0
    loop: start=0, step=1, limit=4
    $region2: #{tpu_custom_call.1} parent=1 // loop_pre_header
      _
    $region3: #{tpu_custom_call.1} parent=1 // loop_header
      %s18 = sphi 0, %s22
      %p19 = scmp.ge.s32.totalorder %s18, 4
      %s28 = sphi 0, %s30
      %s31 = sphi 0, %s28
      %s32 = sphi 0, %s31
      %s48 = sphi 0, %s32
      %s54 = sphi 0, %s56
      %s57 = sphi 0, %s54
      %s58 = sphi 0, %s57
      %s74 = sphi 0, %s58
      %s78 = sphi 0, %s78
      %s80 = sphi 0, %s78
      %s81 = sphi 0, %s80
      %s95 = sphi 0, %s81
      %s99 = sphi 0, %s99
      %s101 = sphi 0, %s99
      %s102 = sphi 0, %s101
      %s116 = sphi 0, %s102
      %s120 = sphi 0, %s120
      %s122 = sphi 0, %s120
      %s123 = sphi 0, %s122
      %s137 = sphi 0, %s123
      %s141 = sphi 0, %s141
      %s143 = sphi 0, %s141
      %s144 = sphi 0, %s143
      %s158 = sphi 0, %s144
      %s162 = sphi 0, %s162
      %s164 = sphi 0, %s162
      %s165 = sphi 0, %s164
      %s179 = sphi 0, %s165
      %s183 = sphi 0, %s183
      %s185 = sphi 0, %s183
      %s186 = sphi 0, %s185
      %s200 = sphi 0, %s186
      %s204 = sphi 0, %s204
      %s206 = sphi 0, %s204
      %s207 = sphi 0, %s206
      %s221 = sphi 0, %s207
      %s227 = sphi 0, %s229
      %s230 = sphi 0, %s227
      %s231 = sphi 0, %s230
      %s247 = sphi 0, %s231
    $region4: #{tpu_custom_call.1} parent=1 // loop_header_branch
      %21 = sbr.rel (%p19) target = $region8
    $region5: #{tpu_custom_call.1} parent=1 // loop_body
      %s23 = ssub.s32 %s18, 1
      %s24 = ssub.s32 %s18, 2
      %s25 = sadd.s32 %s18, 1
      %s26 = ssub.s32 %s18, %s25
      %p27 = scmp.eq.s32.totalorder %s26, 0
      %s29 = sadd.s32 %s28, 1
      %s30 = scalar_select %p27, %s28, %s29
      %p33 = pneg %p27
      %p34 = scmp.eq.s32.totalorder %s18, 1
      %p35 = por %p33, %p34
      %p36 = scmp.ne.s32.totalorder %s28, %s31
      %p37 = scmp.eq.s32.totalorder %s18, 0
      %p38 = por %p36, %p37
      %p39 = scmp.ne.s32.totalorder %s28, %s31
      %p40 = scmp.eq.s32.totalorder %s23, 1
      %p41 = por %p39, %p40
      %p42 = scmp.ne.s32.totalorder %s31, %s32
      %p43 = scmp.eq.s32.totalorder %s23, 0
      %p44 = por %p42, %p43
      %p45 = scmp.ne.s32.totalorder %s31, %s32
      %p46 = scmp.eq.s32.totalorder %s24, 1
      %p47 = por %p45, %p46
      %p49 = scmp.ne.s32.totalorder %s32, %s48
      %p50 = scmp.eq.s32.totalorder %s24, 0
      %p51 = por %p49, %p50
      %s52 = ssub.s32 %s18, %s25
      %p53 = scmp.eq.s32.totalorder %s52, 0
      %s55 = sadd.s32 %s54, 1
      %s56 = scalar_select %p53, %s54, %s55
      %p59 = pneg %p53
      %p60 = scmp.eq.s32.totalorder %s18, 1
      %p61 = por %p59, %p60
      %p62 = scmp.ne.s32.totalorder %s54, %s57
      %p63 = scmp.eq.s32.totalorder %s18, 0
      %p64 = por %p62, %p63
      %p65 = scmp.ne.s32.totalorder %s54, %s57
      %p66 = scmp.eq.s32.totalorder %s23, 1
      %p67 = por %p65, %p66
      %p68 = scmp.ne.s32.totalorder %s57, %s58
      %p69 = scmp.eq.s32.totalorder %s23, 0
      %p70 = por %p68, %p69
      %p71 = scmp.ne.s32.totalorder %s57, %s58
      %p72 = scmp.eq.s32.totalorder %s24, 1
      %p73 = por %p71, %p72
      %p75 = scmp.ne.s32.totalorder %s58, %s74
      %p76 = scmp.eq.s32.totalorder %s24, 0
      %p77 = por %p75, %p76
      %s79 = sadd.s32 %s78, 1
      %p82 = scmp.eq.s32.totalorder %s18, 1
      %p83 = scmp.ne.s32.totalorder %s78, %s80
      %p84 = scmp.eq.s32.totalorder %s18, 0
      %p85 = por %p83, %p84
      %p86 = scmp.ne.s32.totalorder %s78, %s80
      %p87 = scmp.eq.s32.totalorder %s23, 1
      %p88 = por %p86, %p87
      %p89 = scmp.ne.s32.totalorder %s80, %s81
      %p90 = scmp.eq.s32.totalorder %s23, 0
      %p91 = por %p89, %p90
      %p92 = scmp.ne.s32.totalorder %s80, %s81
      %p93 = scmp.eq.s32.totalorder %s24, 1
      %p94 = por %p92, %p93
      %p96 = scmp.ne.s32.totalorder %s81, %s95
      %p97 = scmp.eq.s32.totalorder %s24, 0
      %p98 = por %p96, %p97
      %s100 = sadd.s32 %s99, 1
      %p103 = scmp.eq.s32.totalorder %s18, 1
      %p104 = scmp.ne.s32.totalorder %s99, %s101
      %p105 = scmp.eq.s32.totalorder %s18, 0
      %p106 = por %p104, %p105
      %p107 = scmp.ne.s32.totalorder %s99, %s101
      %p108 = scmp.eq.s32.totalorder %s23, 1
      %p109 = por %p107, %p108
      %p110 = scmp.ne.s32.totalorder %s101, %s102
      %p111 = scmp.eq.s32.totalorder %s23, 0
      %p112 = por %p110, %p111
      %p113 = scmp.ne.s32.totalorder %s101, %s102
      %p114 = scmp.eq.s32.totalorder %s24, 1
      %p115 = por %p113, %p114
      %p117 = scmp.ne.s32.totalorder %s102, %s116
      %p118 = scmp.eq.s32.totalorder %s24, 0
      %p119 = por %p117, %p118
      %s121 = sadd.s32 %s120, 1
      %p124 = scmp.eq.s32.totalorder %s18, 1
      %p125 = scmp.ne.s32.totalorder %s120, %s122
      %p126 = scmp.eq.s32.totalorder %s18, 0
      %p127 = por %p125, %p126
      %p128 = scmp.ne.s32.totalorder %s120, %s122
      %p129 = scmp.eq.s32.totalorder %s23, 1
      %p130 = por %p128, %p129
      %p131 = scmp.ne.s32.totalorder %s122, %s123
      %p132 = scmp.eq.s32.totalorder %s23, 0
      %p133 = por %p131, %p132
      %p134 = scmp.ne.s32.totalorder %s122, %s123
      %p135 = scmp.eq.s32.totalorder %s24, 1
      %p136 = por %p134, %p135
      %p138 = scmp.ne.s32.totalorder %s123, %s137
      %p139 = scmp.eq.s32.totalorder %s24, 0
      %p140 = por %p138, %p139
      %s142 = sadd.s32 %s141, 1
      %p145 = scmp.eq.s32.totalorder %s18, 1
      %p146 = scmp.ne.s32.totalorder %s141, %s143
      %p147 = scmp.eq.s32.totalorder %s18, 0
      %p148 = por %p146, %p147
      %p149 = scmp.ne.s32.totalorder %s141, %s143
      %p150 = scmp.eq.s32.totalorder %s23, 1
      %p151 = por %p149, %p150
      %p152 = scmp.ne.s32.totalorder %s143, %s144
      %p153 = scmp.eq.s32.totalorder %s23, 0
      %p154 = por %p152, %p153
      %p155 = scmp.ne.s32.totalorder %s143, %s144
      %p156 = scmp.eq.s32.totalorder %s24, 1
      %p157 = por %p155, %p156
      %p159 = scmp.ne.s32.totalorder %s144, %s158
      %p160 = scmp.eq.s32.totalorder %s24, 0
      %p161 = por %p159, %p160
      %s163 = sadd.s32 %s162, 1
      %p166 = scmp.eq.s32.totalorder %s18, 1
      %p167 = scmp.ne.s32.totalorder %s162, %s164
      %p168 = scmp.eq.s32.totalorder %s18, 0
      %p169 = por %p167, %p168
      %p170 = scmp.ne.s32.totalorder %s162, %s164
      %p171 = scmp.eq.s32.totalorder %s23, 1
      %p172 = por %p170, %p171
      %p173 = scmp.ne.s32.totalorder %s164, %s165
      %p174 = scmp.eq.s32.totalorder %s23, 0
      %p175 = por %p173, %p174
      %p176 = scmp.ne.s32.totalorder %s164, %s165
      %p177 = scmp.eq.s32.totalorder %s24, 1
      %p178 = por %p176, %p177
      %p180 = scmp.ne.s32.totalorder %s165, %s179
      %p181 = scmp.eq.s32.totalorder %s24, 0
      %p182 = por %p180, %p181
      %s184 = sadd.s32 %s183, 1
      %p187 = scmp.eq.s32.totalorder %s18, 1
      %p188 = scmp.ne.s32.totalorder %s183, %s185
      %p189 = scmp.eq.s32.totalorder %s18, 0
      %p190 = por %p188, %p189
      %p191 = scmp.ne.s32.totalorder %s183, %s185
      %p192 = scmp.eq.s32.totalorder %s23, 1
      %p193 = por %p191, %p192
      %p194 = scmp.ne.s32.totalorder %s185, %s186
      %p195 = scmp.eq.s32.totalorder %s23, 0
      %p196 = por %p194, %p195
      %p197 = scmp.ne.s32.totalorder %s185, %s186
      %p198 = scmp.eq.s32.totalorder %s24, 1
      %p199 = por %p197, %p198
      %p201 = scmp.ne.s32.totalorder %s186, %s200
      %p202 = scmp.eq.s32.totalorder %s24, 0
      %p203 = por %p201, %p202
      %s205 = sadd.s32 %s204, 1
      %p208 = scmp.eq.s32.totalorder %s18, 1
      %p209 = scmp.ne.s32.totalorder %s204, %s206
      %p210 = scmp.eq.s32.totalorder %s18, 0
      %p211 = por %p209, %p210
      %p212 = scmp.ne.s32.totalorder %s204, %s206
      %p213 = scmp.eq.s32.totalorder %s23, 1
      %p214 = por %p212, %p213
      %p215 = scmp.ne.s32.totalorder %s206, %s207
      %p216 = scmp.eq.s32.totalorder %s23, 0
      %p217 = por %p215, %p216
      %p218 = scmp.ne.s32.totalorder %s206, %s207
      %p219 = scmp.eq.s32.totalorder %s24, 1
      %p220 = por %p218, %p219
      %p222 = scmp.ne.s32.totalorder %s207, %s221
      %p223 = scmp.eq.s32.totalorder %s24, 0
      %p224 = por %p222, %p223
      %s225 = ssub.s32 %s18, %s25
      %p226 = scmp.eq.s32.totalorder %s225, 0
      %s228 = sadd.s32 %s227, 1
      %s229 = scalar_select %p226, %s227, %s228
      %p232 = pneg %p226
      %p233 = scmp.eq.s32.totalorder %s18, 1
      %p234 = por %p232, %p233
      %p235 = scmp.ne.s32.totalorder %s227, %s230
      %p236 = scmp.eq.s32.totalorder %s18, 0
      %p237 = por %p235, %p236
      %p238 = scmp.ne.s32.totalorder %s227, %s230
      %p239 = scmp.eq.s32.totalorder %s23, 1
      %p240 = por %p238, %p239
      %p241 = scmp.ne.s32.totalorder %s230, %s231
      %p242 = scmp.eq.s32.totalorder %s23, 0
      %p243 = por %p241, %p242
      %p244 = scmp.ne.s32.totalorder %s230, %s231
      %p245 = scmp.eq.s32.totalorder %s24, 1
      %p246 = por %p244, %p245
      %p248 = scmp.ne.s32.totalorder %s231, %s247
      %p249 = scmp.eq.s32.totalorder %s24, 0
      %p250 = por %p248, %p249
      %p251 = scmp.le.s32.totalorder 1, %s18
      %p252 = scmp.lt.s32.totalorder %s18, 3
      %p253 = pnand %p251, %p252
      %p254 = pneg %p253
      // Predicated region
      $region9: #{tpu_custom_call.1} parent=5 // pred_check
        _
      $region10: #{tpu_custom_call.1} parent=5 // pred_check_branch
        %256 = sbr.rel (%p253) target = $region12
      $region11: #{tpu_custom_call.1} parent=5 // pred_region
        %s257 = ssub.s32 %s18, 1
        // Predicated region
        $region13: #{tpu_custom_call.1} parent=11 // pred_check
          %p258 = pneg %p91
        $region14: #{tpu_custom_call.1} parent=11 // pred_check_branch
          %260 = sbr.rel (%p258) target = $region16
        $region15: #{tpu_custom_call.1} parent=11 // pred_region
          _
        $region16: #{tpu_custom_call.1} parent=11 // pred_fallthru
          _
        // Predicated region
        $region17: #{tpu_custom_call.1} parent=11 // pred_check
          %p261 = pneg %p112
        $region18: #{tpu_custom_call.1} parent=11 // pred_check_branch
          %263 = sbr.rel (%p261) target = $region20
        $region19: #{tpu_custom_call.1} parent=11 // pred_region
          _
        $region20: #{tpu_custom_call.1} parent=11 // pred_fallthru
          _
        // Predicated region
        $region21: #{tpu_custom_call.1} parent=11 // pred_check
          %p264 = pneg %p133
        $region22: #{tpu_custom_call.1} parent=11 // pred_check_branch
          %266 = sbr.rel (%p264) target = $region24
        $region23: #{tpu_custom_call.1} parent=11 // pred_region
          _
        $region24: #{tpu_custom_call.1} parent=11 // pred_fallthru
          _
        // Predicated region
        $region25: #{tpu_custom_call.1} parent=11 // pred_check
          %p267 = pneg %p154
        $region26: #{tpu_custom_call.1} parent=11 // pred_check_branch
          %269 = sbr.rel (%p267) target = $region28
        $region27: #{tpu_custom_call.1} parent=11 // pred_region
          _
        $region28: #{tpu_custom_call.1} parent=11 // pred_fallthru
          _
        // Predicated region
        $region29: #{tpu_custom_call.1} parent=11 // pred_check
          %p270 = pneg %p175
        $region30: #{tpu_custom_call.1} parent=11 // pred_check_branch
          %272 = sbr.rel (%p270) target = $region32
        $region31: #{tpu_custom_call.1} parent=11 // pred_region
          _
        $region32: #{tpu_custom_call.1} parent=11 // pred_fallthru
          _
        // Predicated region
        $region33: #{tpu_custom_call.1} parent=11 // pred_check
          %p273 = pneg %p196
        $region34: #{tpu_custom_call.1} parent=11 // pred_check_branch
          %275 = sbr.rel (%p273) target = $region36
        $region35: #{tpu_custom_call.1} parent=11 // pred_region
          _
        $region36: #{tpu_custom_call.1} parent=11 // pred_fallthru
          _
        // Predicated region
        $region37: #{tpu_custom_call.1} parent=11 // pred_check
          %p276 = pneg %p217
        $region38: #{tpu_custom_call.1} parent=11 // pred_check_branch
          %278 = sbr.rel (%p276) target = $region40
        $region39: #{tpu_custom_call.1} parent=11 // pred_region
          _
        $region40: #{tpu_custom_call.1} parent=11 // pred_fallthru
          _
      $region12: #{tpu_custom_call.1} parent=5 // pred_fallthru
        _
      %p279 = scmp.lt.s32.totalorder %s18, 2
      // Predicated region
      $region41: #{tpu_custom_call.1} parent=5 // pred_check
        %p280 = pneg %p279
      $region42: #{tpu_custom_call.1} parent=5 // pred_check_branch
        %282 = sbr.rel (%p280) target = $region44
      $region43: #{tpu_custom_call.1} parent=5 // pred_region
        // Predicated region
        $region45: #{tpu_custom_call.1} parent=43 // pred_check
          %p283 = pneg %p38
        $region46: #{tpu_custom_call.1} parent=43 // pred_check_branch
          %285 = sbr.rel (%p283) target = $region48
        $region47: #{tpu_custom_call.1} parent=43 // pred_region
          %p286 = scmp.lt.s32.totalorder %s18, 1
          %s287 = scalar_select %p286, %s18, 1
          %s288 = smul.addr %s287, 8
          %s289 = scalar_lea.vmem %s0, %s288
        $region48: #{tpu_custom_call.1} parent=43 // pred_fallthru
          _
        // Predicated region
        $region49: #{tpu_custom_call.1} parent=43 // pred_check
          %p290 = pneg %p64
        $region50: #{tpu_custom_call.1} parent=43 // pred_check_branch
          %292 = sbr.rel (%p290) target = $region52
        $region51: #{tpu_custom_call.1} parent=43 // pred_region
          %s293 = sand.u32 %s54, 1
          %s294 = scalar_lea.sflag [#allocation3], %s293
          %s295 = sand.u32 %s54, 1
          %s296 = smul.addr %s295, 8
          %s297 = scalar_lea.vmem [#allocation2], %s296
          %s299 = ssub.s32 128, 128
          %300 = vsyncadd %s294, %s299
          %s301 = smul.addr %s18, 128
          %s302 = scalar_lea.hbm %s1, %s301
          %s304 = sshll.u32 %s297, 4
          %s305 = int_to_ptr.vmem [resolvable:$true] %s304
          %307 = dma.hbm_to_vmem [thread:$0]  %s302, 128, %s305, %s294
        $region52: #{tpu_custom_call.1} parent=43 // pred_fallthru
          _
      $region44: #{tpu_custom_call.1} parent=5 // pred_fallthru
        _
      %p308 = scmp.le.s32.totalorder 1, %s18
      %p309 = scmp.lt.s32.totalorder %s18, 3
      %p310 = pnand %p308, %p309
      %p311 = pneg %p310
      // Predicated region
      $region53: #{tpu_custom_call.1} parent=5 // pred_check
        _
      $region54: #{tpu_custom_call.1} parent=5 // pred_check_branch
        %313 = sbr.rel (%p310) target = $region56
      $region55: #{tpu_custom_call.1} parent=5 // pred_region
        %s314 = ssub.s32 %s18, 1
        %s315 = sand.u32 %s57, 1
        %s316 = scalar_lea.sflag [#allocation3], %s315
        %s317 = sand.u32 %s57, 1
        %s318 = smul.addr %s317, 8
        %s319 = scalar_lea.vmem [#allocation2], %s318
        // Predicated region
        $region57: #{tpu_custom_call.1} parent=55 // pred_check
          %p320 = pneg %p70
        $region58: #{tpu_custom_call.1} parent=55 // pred_check_branch
          %322 = sbr.rel (%p320) target = $region60
        $region59: #{tpu_custom_call.1} parent=55 // pred_region
          %323 = dma.done %s316, 128
        $region60: #{tpu_custom_call.1} parent=55 // pred_fallthru
          _
        %p324 = scmp.lt.s32.totalorder %s23, 1
        %s325 = scalar_select %p324, %s23, 1
        %s326 = smul.addr %s325, 8
        %s327 = scalar_lea.vmem %s0, %s326
        %p328 = pneg %p44
        %p329 = pneg %p41
        %s330 = sand.u32 %s57, 1
        %s331 = scalar_lea.sflag [#allocation3], %s330
        %s332 = sand.u32 %s57, 1
        %s333 = smul.addr %s332, 8
        %s334 = scalar_lea.vmem [#allocation2], %s333
        %p335 = pneg %p70
        %p336 = pneg %p67
        %p337 = pneg %p91
        %p338 = pneg %p88
        %p339 = pneg %p112
        %p340 = pneg %p109
        %p341 = pneg %p133
        %p342 = pneg %p130
        %p343 = pneg %p154
        %p344 = pneg %p151
        %p345 = pneg %p175
        %p346 = pneg %p172
        %p347 = pneg %p196
        %p348 = pneg %p193
        %p349 = pneg %p217
        %p350 = pneg %p214
        %p351 = pneg %p243
        %p352 = pneg %p240
        %p353 = scmp.lt.s32.totalorder %s23, 1
        %s354 = scalar_select %p353, %s23, 1
        %s355 = smul.addr %s354, 8
        %s356 = scalar_lea.vmem %s9, %s355
        %p357 = scmp.lt.s32.totalorder %s23, 1
        %s358 = scalar_select %p357, %s23, 1
        %s359 = smul.addr %s358, 8
        %s360 = scalar_lea.vmem %s0, %s359
        %p361 = scmp.lt.s32.totalorder %s23, 1
        %s362 = scalar_select %p361, %s23, 1
        %s363 = smul.addr %s362, 8
        %s364 = scalar_lea.vmem %s9, %s363
        %v365 = vld [vmem:[%s360] sm:$0xff]
        %v366 = vld [vmem:[%s2] sm:$0xff]
        %v367 = vld [vmem:[%s2 + $0x8] sm:$0xff]
        %v368 = vld [vmem:[%s2 + $0x10] sm:$0xff]
        %v369 = vld [vmem:[%s2 + $0x18] sm:$0xff]
        %v370 = vld [vmem:[%s3] sm:$0x1]
        %v372 = vlaneseq
        %v373 = vshrl.u32 %v372, 7
        %v374 = vsub.s32 0, %v373
        %v375 = vrot.slane %v370, %v374
        %vm377 = vcmask 261120
        %v379 = vsel %vm377, %v365, 0
        %381 = vmatprep.subr.mxu0 0.0
        %382 = vmatpush1.msra.mxu0 %v366
        %383 = vmatprep.subr.mxu0 0.0
        %384 = vmatpush1.msra.mxu0 %v367
        %385 = vmatprep.subr.mxu0 0.0
        %386 = vmatpush1.msra.mxu0 %v368
        %387 = vmatprep.subr.mxu0 0.0
        %388 = vmatpush1.msra.mxu0 %v369
        %389 = vmatprep.subr.mxu0 0.0
        %390 = vmatpush1.msra.mxu0 0.0
        %391 = vmatprep.subr.mxu0 0.0
        %392 = vmatpush1.msra.mxu0 0.0
        %393 = vmatprep.subr.mxu0 0.0
        %394 = vmatpush1.msra.mxu0 0.0
        %395 = vmatprep.subr.mxu0 0.0
        %396 = vmatpush1.msra.mxu0 0.0
        %397 = vmatprep.subr.mxu0 0.0
        %398 = vmatpush1.msra.mxu0 0.0
        %399 = vmatprep.subr.mxu0 0.0
        %400 = vmatpush1.msra.mxu0 0.0
        %401 = vmatprep.subr.mxu0 0.0
        %402 = vmatpush1.msra.mxu0 0.0
        %403 = vmatprep.subr.mxu0 0.0
        %404 = vmatpush1.msra.mxu0 0.0
        %405 = vmatprep.subr.mxu0 0.0
        %406 = vmatpush1.msra.mxu0 0.0
        %407 = vmatprep.subr.mxu0 0.0
        %408 = vmatpush1.msra.mxu0 0.0
        %409 = vmatprep.subr.mxu0 0.0
        %410 = vmatpush1.msra.mxu0 0.0
        %411 = vmatprep.subr.mxu0 0.0
        %412 = vmatpush1.msra.mxu0 0.0
        %413 = vmatprep.subr.mxu0 0.0
        %414 = vmatpush1.msra.mxu0 0.0
        %415 = vmatprep.subr.mxu0 0.0
        %416 = vmatpush1.msra.mxu0 0.0
        %417 = vmatprep.subr.mxu0 0.0
        %418 = vmatpush1.msra.mxu0 0.0
        %419 = vmatprep.subr.mxu0 0.0
        %420 = vmatpush1.msra.mxu0 0.0
        %421 = vmatprep.subr.mxu0 0.0
        %422 = vmatpush1.msra.mxu0 0.0
        %423 = vmatprep.subr.mxu0 0.0
        %424 = vmatpush1.msra.mxu0 0.0
        %425 = vmatprep.subr.mxu0 0.0
        %426 = vmatpush1.msra.mxu0 0.0
        %427 = vmatprep.subr.mxu0 0.0
        %428 = vmatpush1.msra.mxu0 0.0
        %429 = vmatprep.subr.mxu0 0.0
        %430 = vmatpush1.msra.mxu0 0.0
        %431 = vmatprep.subr.mxu0 0.0
        %432 = vmatpush1.msra.mxu0 0.0
        %433 = vmatprep.subr.mxu0 0.0
        %434 = vmatpush1.msra.mxu0 0.0
        %435 = vmatprep.subr.mxu0 0.0
        %436 = vmatpush1.msra.mxu0 0.0
        %437 = vmatprep.subr.mxu0 0.0
        %438 = vmatpush1.msra.mxu0 0.0
        %439 = vmatprep.subr.mxu0 0.0
        %440 = vmatpush1.msra.mxu0 0.0
        %441 = vmatprep.subr.mxu0 0.0
        %442 = vmatpush1.msra.mxu0 0.0
        %443 = vmatprep.subr.mxu0 0.0
        %444 = vmatpush1.msra.mxu0 0.0
        %445 = vmatprep.mubr.f32.mxu0 0.0
        %446 = vmatmul.mubr.f32.gmra.mrb[0].mxu0 %v379
        %v447 = vpop.f32.mrb[0].mxu0
        %v448 = vadd.f32 %v375, %v447
        %v449 = vpop.f32.mrb[0].mxu0
        %450 = vdwg.mxu0
        %v451 = vtanh.pop %v448
        %v452 = vld [vmem:[%s319] sm:$0xff]
        %v453 = vld [vmem:[%s4] sm:$0xff]
        %v454 = vld [vmem:[%s4 + $0x8] sm:$0xff]
        %v455 = vld [vmem:[%s5] sm:$0x1]
        %v457 = vlaneseq
        %v458 = vshrl.u32 %v457, 7
        %v459 = vsub.s32 0, %v458
        %v460 = vrot.slane %v455, %v459
        %vm462 = vcmask 130048
        %v464 = vsel %vm462, %v452, 0
        %466 = vmatprep.subr.mxu0 0.0
        %467 = vmatpush1.msra.mxu0 %v453
        %468 = vmatprep.subr.mxu0 0.0
        %469 = vmatpush1.msra.mxu0 %v454
        %470 = vmatprep.subr.mxu0 0.0
        %471 = vmatpush1.msra.mxu0 0.0
        %472 = vmatprep.subr.mxu0 0.0
        %473 = vmatpush1.msra.mxu0 0.0
        %474 = vmatprep.subr.mxu0 0.0
        %475 = vmatpush1.msra.mxu0 0.0
        %476 = vmatprep.subr.mxu0 0.0
        %477 = vmatpush1.msra.mxu0 0.0
        %478 = vmatprep.subr.mxu0 0.0
        %479 = vmatpush1.msra.mxu0 0.0
        %480 = vmatprep.subr.mxu0 0.0
        %481 = vmatpush1.msra.mxu0 0.0
        %482 = vmatprep.subr.mxu0 0.0
        %483 = vmatpush1.msra.mxu0 0.0
        %484 = vmatprep.subr.mxu0 0.0
        %485 = vmatpush1.msra.mxu0 0.0
        %486 = vmatprep.subr.mxu0 0.0
        %487 = vmatpush1.msra.mxu0 0.0
        %488 = vmatprep.subr.mxu0 0.0
        %489 = vmatpush1.msra.mxu0 0.0
        %490 = vmatprep.subr.mxu0 0.0
        %491 = vmatpush1.msra.mxu0 0.0
        %492 = vmatprep.subr.mxu0 0.0
        %493 = vmatpush1.msra.mxu0 0.0
        %494 = vmatprep.subr.mxu0 0.0
        %495 = vmatpush1.msra.mxu0 0.0
        %496 = vmatprep.subr.mxu0 0.0
        %497 = vmatpush1.msra.mxu0 0.0
        %498 = vmatprep.subr.mxu0 0.0
        %499 = vmatpush1.msra.mxu0 0.0
        %500 = vmatprep.subr.mxu0 0.0
        %501 = vmatpush1.msra.mxu0 0.0
        %502 = vmatprep.subr.mxu0 0.0
        %503 = vmatpush1.msra.mxu0 0.0
        %504 = vmatprep.subr.mxu0 0.0
        %505 = vmatpush1.msra.mxu0 0.0
        %506 = vmatprep.subr.mxu0 0.0
        %507 = vmatpush1.msra.mxu0 0.0
        %508 = vmatprep.subr.mxu0 0.0
        %509 = vmatpush1.msra.mxu0 0.0
        %510 = vmatprep.subr.mxu0 0.0
        %511 = vmatpush1.msra.mxu0 0.0
        %512 = vmatprep.subr.mxu0 0.0
        %513 = vmatpush1.msra.mxu0 0.0
        %514 = vmatprep.subr.mxu0 0.0
        %515 = vmatpush1.msra.mxu0 0.0
        %516 = vmatprep.subr.mxu0 0.0
        %517 = vmatpush1.msra.mxu0 0.0
        %518 = vmatprep.subr.mxu0 0.0
        %519 = vmatpush1.msra.mxu0 0.0
        %520 = vmatprep.subr.mxu0 0.0
        %521 = vmatpush1.msra.mxu0 0.0
        %522 = vmatprep.subr.mxu0 0.0
        %523 = vmatpush1.msra.mxu0 0.0
        %524 = vmatprep.subr.mxu0 0.0
        %525 = vmatpush1.msra.mxu0 0.0
        %526 = vmatprep.subr.mxu0 0.0
        %527 = vmatpush1.msra.mxu0 0.0
        %528 = vmatprep.subr.mxu0 0.0
        %529 = vmatpush1.msra.mxu0 0.0
        %530 = vmatprep.mubr.f32.mxu0 0.0
        %531 = vmatmul.mubr.f32.gmra.mrb[0].mxu0 %v464
        %v532 = vpop.f32.mrb[0].mxu0
        %v533 = vadd.f32 %v460, %v532
        %v534 = vpop.f32.mrb[0].mxu0
        %535 = vdwg.mxu0
        %v536 = vtanh.pop %v533
        %v537 = vld [vmem:[%s6] sm:$0xff]
        %v538 = vld [vmem:[%s6 + $0x8] sm:$0xff]
        %v539 = vld [vmem:[%s6 + $0x10] sm:$0xff]
        %v540 = vld [vmem:[%s6 + $0x18] sm:$0xff]
        %v541 = vld [vmem:[%s7] sm:$0xff]
        %v542 = vld [vmem:[%s7 + $0x8] sm:$0xff]
        %v544 = vsel %vm462, %v536, 0
        %546 = vmatprep.subr.mxu0 0.0
        %547 = vmatpush1.msra.mxu0 %v541
        %548 = vmatprep.subr.mxu0 0.0
        %549 = vmatpush1.msra.mxu0 %v542
        %550 = vmatprep.subr.mxu0 0.0
        %551 = vmatpush1.msra.mxu0 0.0
        %552 = vmatprep.subr.mxu0 0.0
        %553 = vmatpush1.msra.mxu0 0.0
        %554 = vmatprep.subr.mxu0 0.0
        %555 = vmatpush1.msra.mxu0 0.0
        %556 = vmatprep.subr.mxu0 0.0
        %557 = vmatpush1.msra.mxu0 0.0
        %558 = vmatprep.subr.mxu0 0.0
        %559 = vmatpush1.msra.mxu0 0.0
        %560 = vmatprep.subr.mxu0 0.0
        %561 = vmatpush1.msra.mxu0 0.0
        %562 = vmatprep.subr.mxu0 0.0
        %563 = vmatpush1.msra.mxu0 0.0
        %564 = vmatprep.subr.mxu0 0.0
        %565 = vmatpush1.msra.mxu0 0.0
        %566 = vmatprep.subr.mxu0 0.0
        %567 = vmatpush1.msra.mxu0 0.0
        %568 = vmatprep.subr.mxu0 0.0
        %569 = vmatpush1.msra.mxu0 0.0
        %570 = vmatprep.subr.mxu0 0.0
        %571 = vmatpush1.msra.mxu0 0.0
        %572 = vmatprep.subr.mxu0 0.0
        %573 = vmatpush1.msra.mxu0 0.0
        %574 = vmatprep.subr.mxu0 0.0
        %575 = vmatpush1.msra.mxu0 0.0
        %576 = vmatprep.subr.mxu0 0.0
        %577 = vmatpush1.msra.mxu0 0.0
        %578 = vmatprep.subr.mxu0 0.0
        %579 = vmatpush1.msra.mxu0 0.0
        %580 = vmatprep.subr.mxu0 0.0
        %581 = vmatpush1.msra.mxu0 0.0
        %582 = vmatprep.subr.mxu0 0.0
        %583 = vmatpush1.msra.mxu0 0.0
        %584 = vmatprep.subr.mxu0 0.0
        %585 = vmatpush1.msra.mxu0 0.0
        %586 = vmatprep.subr.mxu0 0.0
        %587 = vmatpush1.msra.mxu0 0.0
        %588 = vmatprep.subr.mxu0 0.0
        %589 = vmatpush1.msra.mxu0 0.0
        %590 = vmatprep.subr.mxu0 0.0
        %591 = vmatpush1.msra.mxu0 0.0
        %592 = vmatprep.subr.mxu0 0.0
        %593 = vmatpush1.msra.mxu0 0.0
        %594 = vmatprep.subr.mxu0 0.0
        %595 = vmatpush1.msra.mxu0 0.0
        %596 = vmatprep.subr.mxu0 0.0
        %597 = vmatpush1.msra.mxu0 0.0
        %598 = vmatprep.subr.mxu0 0.0
        %599 = vmatpush1.msra.mxu0 0.0
        %600 = vmatprep.subr.mxu0 0.0
        %601 = vmatpush1.msra.mxu0 0.0
        %602 = vmatprep.subr.mxu0 0.0
        %603 = vmatpush1.msra.mxu0 0.0
        %604 = vmatprep.subr.mxu0 0.0
        %605 = vmatpush1.msra.mxu0 0.0
        %606 = vmatprep.subr.mxu0 0.0
        %607 = vmatpush1.msra.mxu0 0.0
        %608 = vmatprep.subr.mxu0 0.0
        %609 = vmatpush1.msra.mxu0 0.0
        %610 = vmatprep.mubr.f32.mxu0 0.0
        %611 = vmatmul.mubr.f32.gmra.mrb[0].mxu0 %v544
        %v612 = vpop.f32.mrb[0].mxu0
        %v613 = vadd.f32 0.0, %v612
        %v614 = vpop.f32.mrb[0].mxu0
        %615 = vdwg.mxu0
        %v617 = vsel %vm377, %v451, 0
        %619 = vmatprep.subr.mxu0 0.0
        %620 = vmatpush1.msra.mxu0 %v537
        %621 = vmatprep.subr.mxu0 0.0
        %622 = vmatpush1.msra.mxu0 %v538
        %623 = vmatprep.subr.mxu0 0.0
        %624 = vmatpush1.msra.mxu0 %v539
        %625 = vmatprep.subr.mxu0 0.0
        %626 = vmatpush1.msra.mxu0 %v540
        %627 = vmatprep.subr.mxu0 0.0
        %628 = vmatpush1.msra.mxu0 0.0
        %629 = vmatprep.subr.mxu0 0.0
        %630 = vmatpush1.msra.mxu0 0.0
        %631 = vmatprep.subr.mxu0 0.0
        %632 = vmatpush1.msra.mxu0 0.0
        %633 = vmatprep.subr.mxu0 0.0
        %634 = vmatpush1.msra.mxu0 0.0
        %635 = vmatprep.subr.mxu0 0.0
        %636 = vmatpush1.msra.mxu0 0.0
        %637 = vmatprep.subr.mxu0 0.0
        %638 = vmatpush1.msra.mxu0 0.0
        %639 = vmatprep.subr.mxu0 0.0
        %640 = vmatpush1.msra.mxu0 0.0
        %641 = vmatprep.subr.mxu0 0.0
        %642 = vmatpush1.msra.mxu0 0.0
        %643 = vmatprep.subr.mxu0 0.0
        %644 = vmatpush1.msra.mxu0 0.0
        %645 = vmatprep.subr.mxu0 0.0
        %646 = vmatpush1.msra.mxu0 0.0
        %647 = vmatprep.subr.mxu0 0.0
        %648 = vmatpush1.msra.mxu0 0.0
        %649 = vmatprep.subr.mxu0 0.0
        %650 = vmatpush1.msra.mxu0 0.0
        %651 = vmatprep.subr.mxu0 0.0
        %652 = vmatpush1.msra.mxu0 0.0
        %653 = vmatprep.subr.mxu0 0.0
        %654 = vmatpush1.msra.mxu0 0.0
        %655 = vmatprep.subr.mxu0 0.0
        %656 = vmatpush1.msra.mxu0 0.0
        %657 = vmatprep.subr.mxu0 0.0
        %658 = vmatpush1.msra.mxu0 0.0
        %659 = vmatprep.subr.mxu0 0.0
        %660 = vmatpush1.msra.mxu0 0.0
        %661 = vmatprep.subr.mxu0 0.0
        %662 = vmatpush1.msra.mxu0 0.0
        %663 = vmatprep.subr.mxu0 0.0
        %664 = vmatpush1.msra.mxu0 0.0
        %665 = vmatprep.subr.mxu0 0.0
        %666 = vmatpush1.msra.mxu0 0.0
        %667 = vmatprep.subr.mxu0 0.0
        %668 = vmatpush1.msra.mxu0 0.0
        %669 = vmatprep.subr.mxu0 0.0
        %670 = vmatpush1.msra.mxu0 0.0
        %671 = vmatprep.subr.mxu0 0.0
        %672 = vmatpush1.msra.mxu0 0.0
        %673 = vmatprep.subr.mxu0 0.0
        %674 = vmatpush1.msra.mxu0 0.0
        %675 = vmatprep.subr.mxu0 0.0
        %676 = vmatpush1.msra.mxu0 0.0
        %677 = vmatprep.subr.mxu0 0.0
        %678 = vmatpush1.msra.mxu0 0.0
        %679 = vmatprep.subr.mxu0 0.0
        %680 = vmatpush1.msra.mxu0 0.0
        %681 = vmatprep.subr.mxu0 0.0
        %682 = vmatpush1.msra.mxu0 0.0
        %683 = vmatprep.mubr.f32.mxu0 0.0
        %684 = vmatmul.mubr.f32.gmra.mrb[0].mxu0 %v617
        %v685 = vpop.f32.mrb[0].mxu0
        %v686 = vadd.f32 %v613, %v685
        %v687 = vpop.f32.mrb[0].mxu0
        %688 = vdwg.mxu0
        %v689 = vld [vmem:[%s8] sm:$0x1]
        %v691 = vlaneseq
        %v692 = vshrl.u32 %v691, 7
        %v693 = vsub.s32 0, %v692
        %v694 = vrot.slane %v689, %v693
        %v696 = vadd.f32 %v686, %v694
        %vm697 = vcmask 31744
        %698 = vst.msk [vmem:[%s364] sm:$0xff] %vm697, %v696
        %p699 = scmp.lt.s32.totalorder %s23, 1
        %s700 = scalar_select %p699, %s23, 1
        %s701 = smul.addr %s700, 8
        %s702 = scalar_lea.vmem %s9, %s701
        // Predicated region
        $region61: #{tpu_custom_call.1} parent=55 // pred_check
          %p703 = pneg %p240
        $region62: #{tpu_custom_call.1} parent=55 // pred_check_branch
          %705 = sbr.rel (%p703) target = $region64
        $region63: #{tpu_custom_call.1} parent=55 // pred_region
          _
        $region64: #{tpu_custom_call.1} parent=55 // pred_fallthru
          _
      $region56: #{tpu_custom_call.1} parent=5 // pred_fallthru
        _
      %p706 = scmp.le.s32.totalorder 2, %s18
      // Predicated region
      $region65: #{tpu_custom_call.1} parent=5 // pred_check
        %p707 = pneg %p706
      $region66: #{tpu_custom_call.1} parent=5 // pred_check_branch
        %709 = sbr.rel (%p707) target = $region68
      $region67: #{tpu_custom_call.1} parent=5 // pred_region
        %s710 = ssub.s32 %s18, 2
        // Predicated region
        $region69: #{tpu_custom_call.1} parent=67 // pred_check
          %p711 = pneg %p246
        $region70: #{tpu_custom_call.1} parent=67 // pred_check_branch
          %713 = sbr.rel (%p711) target = $region72
        $region71: #{tpu_custom_call.1} parent=67 // pred_region
          %p714 = scmp.lt.s32.totalorder %s24, 1
          %s715 = scalar_select %p714, %s24, 1
          %s716 = smul.addr %s715, 8
          %s717 = scalar_lea.vmem %s9, %s716
        $region72: #{tpu_custom_call.1} parent=67 // pred_fallthru
          _
      $region68: #{tpu_custom_call.1} parent=5 // pred_fallthru
        _
    $region6: #{tpu_custom_call.1} parent=1 // loop_footer
      %s22 = sadd.s32 1, %s18
    $region7: #{tpu_custom_call.1} parent=1 // loop_footer_branch
      %17 = sbr.rel target = $region3
    $region8: #{tpu_custom_call.1} parent=1 // loop_exit
      _
    %718 = vsyncpa [#allocation3], 1
    %s719 = scalar_lea.sflag [#allocation3], 1
    %720 = vsyncpa %s719, 1

</llo_original>
